<compile_context>
chip_gen: v7x
topology: tpu7x:2x2x1
jax: 0.10.0
libtpu: 0.0.40
codegen_flags: <defaults>
</compile_context>

<pallas_src>
import functools

import numpy as np
import jax
import jax.numpy as jnp
from jax.experimental import pallas as pl
from jax.experimental.pallas import tpu as pltpu

EPS_BN = 1e-5
EPS_GATE = 1e-6
TILE_M = 256   # edge-row tile; >=256 keeps the 256x256 MXU (v6e/v7x) well fed

_VSPEC = pl.BlockSpec(memory_space=pltpu.MemorySpace.VMEM)


def _vmem_limit_bytes():
    # 48 MiB on parts with 64 MiB physical VMEM per core (v7x), 64 MiB on
    # 128-MiB parts (v5e / v6e).
    try:
        cap = pltpu.get_tpu_info().vmem_capacity_bytes
    except Exception:
        cap = 128 * 1024 * 1024
    return 48 * 1024 * 1024 if cap <= 64 * 1024 * 1024 else 64 * 1024 * 1024


_VMEM_LIMIT = _vmem_limit_bytes()
_CPARAMS = pltpu.CompilerParams(vmem_limit_bytes=_VMEM_LIMIT)


# ----------------------------------------------------------------------------
# in-kernel math helpers (traced inside Pallas kernels)
# ----------------------------------------------------------------------------
def _mm(a_bf16, b_bf16):
    # bf16 x bf16 matmul with f32 accumulation (MXU-native path)
    return jax.lax.dot_general(
        a_bf16, b_bf16, (((1,), (0,)), ((), ())),
        preferred_element_type=jnp.float32)


def _linear(x, w_bf16, b):
    # x: (R, Fin) any float, w: (Fin, Fout) bf16 pre-transposed, b: (1, Fout) f32
    return _mm(x.astype(jnp.bfloat16), w_bf16) + b


def _bn_silu(z, gamma, beta):
    # BatchNorm1d (training-mode batch statistics, biased variance) + SiLU
    mean = jnp.mean(z, axis=0, keepdims=True)
    var = jnp.mean((z - mean) ** 2, axis=0, keepdims=True)
    a = gamma * (z - mean) * jax.lax.rsqrt(var + EPS_BN) + beta
    return a * jax.nn.sigmoid(a)


# ----------------------------------------------------------------------------
# Pallas kernels
# ----------------------------------------------------------------------------
def mlp_kernel(x_ref, w_ref, b_ref, g_ref, be_ref, o_ref):
    # Linear + BatchNorm1d(train stats) + SiLU  (MLPLayer)
    z = _linear(x_ref[...], w_ref[...], b_ref[...])
    o_ref[...] = _bn_silu(z, g_ref[...], be_ref[...])


def embed_kernel(d_ref, c_ref,
                 w1_ref, b1_ref, g1_ref, be1_ref,
                 w2_ref, b2_ref, g2_ref, be2_ref,
                 o_ref, *, gamma):
    # fused RBFExpansion -> MLPLayer -> MLPLayer  (edge / angle embedding)
    d = d_ref[...]                      # (R, 1)
    c = c_ref[...]                      # (1, bins)
    rbf = jnp.exp(-gamma * (d - c) ** 2)
    h1 = _bn_silu(_linear(rbf, w1_ref[...], b1_ref[...]),
                  g1_ref[...], be1_ref[...])
    o_ref[...] = _bn_silu(_linear(h1, w2_ref[...], b2_ref[...]),
                          g2_ref[...], be2_ref[...])


def eggc_pass1_kernel(node_ref, edge_ref, ii_col_ref, jj_col_ref, ii_row_ref,
                      wg_ref, bg_ref, we_ref, be_ref, wsu_ref, bsu_ref,
                      gn_ref, betan_ref,
                      y_ref, x_ref, mean_ref, var_ref,
                      nproj_sc, scat_sc, ysum_sc, ysq_sc,
                      *, m_true):
    # EdgeGatedGraphConv pass 1: gates + gather + accumulated scatter + node
    # update finalisation.  Grid: edge tiles (reduction axis, "arbitrary").
    step = pl.program_id(0)
    n = node_ref.shape[0]
    f = node_ref.shape[1]
    tm = edge_ref.shape[0]

    @pl.when(step == 0)
    def _init():
        # fused node projection [src_gate | dst_gate | dst_update], kept bf16
        nproj = _linear(node_ref[...], wg_ref[...], bg_ref[...])       # (N, 3F)
        nproj_sc[...] = nproj.astype(jnp.bfloat16)
        scat_sc[...] = jnp.zeros_like(scat_sc)
        ysum_sc[...] = jnp.zeros_like(ysum_sc)
        ysq_sc[...] = jnp.zeros_like(ysq_sc)

    ii_col = ii_col_ref[...]                                           # (tm, 1)
    jj_col = jj_col_ref[...]                                           # (tm, 1)
    ii_row = ii_row_ref[...]                                           # (1, tm)

    # per-tile one-hots; pad rows carry idx == N -> all-zero rows / columns
    col_n = jax.lax.broadcasted_iota(jnp.int32, (tm, n), 1)
    oh_i = (col_n == ii_col).astype(jnp.bfloat16)                      # gather idx_i
    oh_j = (col_n == jj_col).astype(jnp.bfloat16)                      # gather idx_j
    row_n = jax.lax.broadcasted_iota(jnp.int32, (n, tm), 0)
    oh_i_t = (row_n == ii_row).astype(jnp.bfloat16)                    # scatter (transposed)

    e_gate = _linear(edge_ref[...], we_ref[...], be_ref[...])          # (tm, F)
    e_src = _mm(oh_i, nproj_sc[:, 0:f])                                # src_gate[idx_i]
    gath_j = _mm(oh_j, nproj_sc[:, f:3 * f])                           # (tm, 2F)

    y = e_src + gath_j[:, 0:f] + e_gate
    sigma = jax.nn.sigmoid(y)
    m = gath_j[:, f:2 * f] * sigma

    # scatter_add over idx_i: standard (N,tm)@(tm,2F) contraction, f32 accumulate
    ms = jnp.concatenate(
        [m.astype(jnp.bfloat16), sigma.astype(jnp.bfloat16)], axis=1)
    scat_sc[...] += _mm(oh_i_t, ms)

    # BatchNorm(y) partial sums; pad rows masked out via index validity
    valid = (ii_col < n).astype(jnp.float32)                           # (tm, 1)
    ym = y * valid
    ysum_sc[...] += jnp.sum(ym, axis=0, keepdims=True)
    ysq_sc[...] += jnp.sum(ym * y, axis=0, keepdims=True)

    y_ref[...] = y                                                     # pre-BN y

    @pl.when(step == pl.num_programs(0) - 1)
    def _finalize():
        node = node_ref[...]
        h = scat_sc[:, 0:f] / (scat_sc[:, f:2 * f] + EPS_GATE)
        x = _linear(node, wsu_ref[...], bsu_ref[...]) + h
        x = _bn_silu(x, gn_ref[...], betan_ref[...])
        x_ref[...] = node + x                                          # residual
        mean = ysum_sc[...] / m_true
        var = jnp.maximum(ysq_sc[...] / m_true - mean * mean, 0.0)
        mean_ref[...] = mean
        var_ref[...] = var


def eggc_pass2_kernel(edge_ref, y_ref, mean_ref, var_ref, ge_ref, betae_ref,
                      out_ref):
    # EdgeGatedGraphConv pass 2: edge BN normalise + SiLU + residual.
    yn = (y_ref[...] - mean_ref[...]) * jax.lax.rsqrt(var_ref[...] + EPS_BN)
    a = ge_ref[...] * yn + betae_ref[...]
    out_ref[...] = edge_ref[...] + a * jax.nn.sigmoid(a)


def readout_kernel(x_ref, batch_ref, w_ref, b_ref, o_ref):
    # per-graph mean aggregation + final Linear (hidden -> 1 via VPU reduce)
    x = x_ref[...]                                                     # (N, F)
    n_graphs = o_ref.shape[0]
    n_nodes = x.shape[0]
    row_g = jax.lax.broadcasted_iota(jnp.int32, (n_graphs, n_nodes), 0)
    oh_t = (row_g == batch_ref[...]).astype(jnp.float32)               # (B, N)
    counts = jnp.sum(oh_t, axis=1, keepdims=True)                      # (B, 1)
    summed = jax.lax.dot_general(
        oh_t, x, (((1,), (0,)), ((), ())),
        preferred_element_type=jnp.float32)                            # (B, F)
    mean = summed / jnp.maximum(counts, 1.0)                           # no NaN
    o_ref[...] = jnp.sum(mean * w_ref[...], axis=1, keepdims=True) + b_ref[...]


# ----------------------------------------------------------------------------
# wrappers around pallas_call
# ----------------------------------------------------------------------------
def call_mlp(x, p):
    rows = x.shape[0]
    fout = p["w"].shape[1]
    return pl.pallas_call(
        mlp_kernel,
        out_shape=jax.ShapeDtypeStruct((rows, fout), jnp.float32),
        in_specs=[_VSPEC] * 5,
        out_specs=_VSPEC,
        compiler_params=_CPARAMS,
    )(x, p["w"], p["b"], p["gamma"], p["beta"])


def call_embed(d, centers, gamma, mlp1, mlp2):
    rows = d.shape[0]
    hidden = mlp2["w"].shape[1]
    return pl.pallas_call(
        functools.partial(embed_kernel, gamma=float(gamma)),
        out_shape=jax.ShapeDtypeStruct((rows, hidden), jnp.float32),
        in_specs=[_VSPEC] * 10,
        out_specs=_VSPEC,
        compiler_params=_CPARAMS,
    )(d, centers,
      mlp1["w"], mlp1["b"], mlp1["gamma"], mlp1["beta"],
      mlp2["w"], mlp2["b"], mlp2["gamma"], mlp2["beta"])


def call_eggc(node_feats, edge_feats, idx_i, idx_j, p, tile_m=TILE_M):
    """Full EdgeGatedGraphConv (residual=True), tiled over edge rows."""
    n, f = node_feats.shape
    m = edge_feats.shape[0]
    n_tiles = -(-m // tile_m)
    m_pad = n_tiles * tile_m
    pad = m_pad - m

    edge_p = jnp.pad(edge_feats, ((0, pad), (0, 0)))
    ii = jnp.pad(idx_i.astype(jnp.int32), (0, pad), constant_values=n)
    jj = jnp.pad(idx_j.astype(jnp.int32), (0, pad), constant_values=n)
    ii_col = ii.reshape(m_pad, 1)
    jj_col = jj.reshape(m_pad, 1)
    ii_row = ii.reshape(1, m_pad)

    const2 = lambda e: (0, 0)
    row_tile = pl.BlockSpec((tile_m, f), lambda e: (e, 0))

    in_specs = [
        pl.BlockSpec((n, f), const2),                  # node feats (resident)
        row_tile,                                      # edge feats tile
        pl.BlockSpec((tile_m, 1), lambda e: (e, 0)),   # idx_i (column)
        pl.BlockSpec((tile_m, 1), lambda e: (e, 0)),   # idx_j (column)
        pl.BlockSpec((1, tile_m), lambda e: (0, e)),   # idx_i (row, for scatter)
        pl.BlockSpec((f, 3 * f), const2),              # [src_gate|dst_gate|dst_update] W
        pl.BlockSpec((1, 3 * f), const2),
        pl.BlockSpec((f, f), const2),                  # edge_gate W
        pl.BlockSpec((1, f), const2),
        pl.BlockSpec((f, f), const2),                  # src_update W
        pl.BlockSpec((1, f), const2),
        pl.BlockSpec((1, f), const2),                  # bn_nodes gamma
        pl.BlockSpec((1, f), const2),                  # bn_nodes beta
    ]
    out_shapes = (
        jax.ShapeDtypeStruct((m_pad, f), jnp.float32),   # y (pre-BN)
        jax.ShapeDtypeStruct((n, f), jnp.float32),       # updated node feats
        jax.ShapeDtypeStruct((1, f), jnp.float32),       # mean(y)
        jax.ShapeDtypeStruct((1, f), jnp.float32),       # var(y)
    )
    out_specs = (
        row_tile,
        pl.BlockSpec((n, f), const2),
        pl.BlockSpec((1, f), const2),
        pl.BlockSpec((1, f), const2),
    )
    scratch = [
        pltpu.VMEM((n, 3 * f), jnp.bfloat16),   # node projections
        pltpu.VMEM((n, 2 * f), jnp.float32),    # scatter accumulator [m | sigma]
        pltpu.VMEM((1, f), jnp.float32),        # sum(y)
        pltpu.VMEM((1, f), jnp.float32),        # sum(y*y)
    ]

    y_pad, x_out, y_mean, y_var = pl.pallas_call(
        functools.partial(eggc_pass1_kernel, m_true=float(m)),
        grid=(n_tiles,),
        out_shape=out_shapes,
        in_specs=in_specs,
        out_specs=out_specs,
        scratch_shapes=scratch,
        compiler_params=pltpu.CompilerParams(
            dimension_semantics=("arbitrary",),
            vmem_limit_bytes=_VMEM_LIMIT),
    )(node_feats, edge_p, ii_col, jj_col, ii_row,
      p["w_gcat"], p["b_gcat"], p["w_eg"], p["b_eg"], p["w_su"], p["b_su"],
      p["bn_nodes"][0], p["bn_nodes"][1])

    y_out_pad = pl.pallas_call(
        eggc_pass2_kernel,
        grid=(n_tiles,),
        out_shape=jax.ShapeDtypeStruct((m_pad, f), jnp.float32),
        in_specs=[
            row_tile,                                  # edge residual tile
            row_tile,                                  # y tile
            pl.BlockSpec((1, f), const2),              # mean
            pl.BlockSpec((1, f), const2),              # var
            pl.BlockSpec((1, f), const2),              # bn_edges gamma
            pl.BlockSpec((1, f), const2),              # bn_edges beta
        ],
        out_specs=row_tile,
        compiler_params=pltpu.CompilerParams(
            dimension_semantics=("parallel",),
            vmem_limit_bytes=_VMEM_LIMIT),
    )(edge_p, y_pad, y_mean, y_var, p["bn_edges"][0], p["bn_edges"][1])

    return x_out, y_out_pad[:m]


def call_readout(x, batch_row, p, num_graphs):
    return pl.pallas_call(
        readout_kernel,
        out_shape=jax.ShapeDtypeStruct((num_graphs, 1), jnp.float32),
        in_specs=[_VSPEC] * 4,
        out_specs=_VSPEC,
        compiler_params=_CPARAMS,
    )(x, batch_row, p["w"], p["b"])


# ----------------------------------------------------------------------------
# parameter initialisation (deterministic, synthetic); weights pre-transposed,
# stored bf16 for MXU-native matmuls (biases / BN params stay f32).
# ----------------------------------------------------------------------------
def init_linear(key, fin, fout, w_dtype=jnp.bfloat16):
    k1, k2 = jax.random.split(key)
    lim = 1.0 / np.sqrt(fin)
    w = jax.random.uniform(k1, (fin, fout), jnp.float32, -lim, lim).astype(w_dtype)
    b = jax.random.uniform(k2, (1, fout), jnp.float32, -lim, lim)
    return w, b


def init_mlp(key, fin, fout):
    w, b = init_linear(key, fin, fout)
    return dict(w=w, b=b,
                gamma=jnp.ones((1, fout), jnp.float32),
                beta=jnp.zeros((1, fout), jnp.float32))


def init_eggc(key, feat):
    ks = jax.random.split(key, 5)
    w_sg, b_sg = init_linear(ks[0], feat, feat)   # src_gate
    w_dg, b_dg = init_linear(ks[1], feat, feat)   # dst_gate
    w_du, b_du = init_linear(ks[2], feat, feat)   # dst_update
    w_su, b_su = init_linear(ks[3], feat, feat)   # src_update
    w_eg, b_eg = init_linear(ks[4], feat, feat)   # edge_gate
    # fused node-side weight for pass 1: [src_gate | dst_gate | dst_update]
    w_gcat = jnp.concatenate([w_sg, w_dg, w_du], axis=1)   # (F, 3F) bf16
    b_gcat = jnp.concatenate([b_sg, b_dg, b_du], axis=1)   # (1, 3F) f32
    return dict(
        w_gcat=w_gcat, b_gcat=b_gcat, w_eg=w_eg, b_eg=b_eg,
        w_su=w_su, b_su=b_su,
        bn_nodes=(jnp.ones((1, feat), jnp.float32), jnp.zeros((1, feat), jnp.float32)),
        bn_edges=(jnp.ones((1, feat), jnp.float32), jnp.zeros((1, feat), jnp.float32)),
    )


def init_alignn(key, node_in=1, emb=64, trip_bins=32, hidden=128,
                out_size=1, centers=32, a_layers=2, g_layers=2):
    assert out_size == 1  # readout uses a VPU row-reduce for the 1-wide output
    n_keys = 8 + 2 * a_layers + g_layers
    ks = list(jax.random.split(key, n_keys))
    params = {}
    params["atom_emb"] = init_mlp(ks.pop(0), node_in, hidden)

    # edge embedding: RBF(2, 4, centers) -> MLP(centers, emb) -> MLP(emb, hidden)
    edge_centers = np.linspace(2.0, 4.0, centers, dtype=np.float32)
    params["edge_rbf_centers"] = jnp.asarray(edge_centers).reshape(1, centers)
    params["edge_rbf_gamma"] = float(1.0 / np.diff(edge_centers).mean())
    params["edge_mlp1"] = init_mlp(ks.pop(0), centers, emb)
    params["edge_mlp2"] = init_mlp(ks.pop(0), emb, hidden)

    # angle embedding: RBF(-1, 1, trip_bins) -> MLP(trip_bins, emb) -> MLP(emb, hidden)
    angle_centers = np.linspace(-1.0, 1.0, trip_bins, dtype=np.float32)
    params["angle_rbf_centers"] = jnp.asarray(angle_centers).reshape(1, trip_bins)
    params["angle_rbf_gamma"] = float(1.0 / np.diff(angle_centers).mean())
    params["angle_mlp1"] = init_mlp(ks.pop(0), trip_bins, emb)
    params["angle_mlp2"] = init_mlp(ks.pop(0), emb, hidden)

    params["alignn_layers"] = []
    for _ in range(a_layers):
        params["alignn_layers"].append(dict(
            edge_update=init_eggc(ks.pop(0), hidden),
            node_update=init_eggc(ks.pop(0), hidden),
        ))
    params["gcn_layers"] = [init_eggc(ks.pop(0), hidden) for _ in range(g_layers)]

    kw, kb = jax.random.split(ks.pop(0))
    lim = 1.0 / np.sqrt(hidden)
    params["out"] = dict(
        w=jax.random.uniform(kw, (1, hidden), jnp.float32, -lim, lim),
        b=jax.random.uniform(kb, (1, 1), jnp.float32, -lim, lim))
    return params


# ----------------------------------------------------------------------------
# graph preprocessing glue (host side, plain numpy / jnp)
# ----------------------------------------------------------------------------
def create_line_graph(edge_index):
    # TODO(synk): data-dependent output size; kept as host-side preprocessing.
    ind_i, ind_j = np.asarray(edge_index[0]), np.asarray(edge_index[1])
    n_edges = ind_i.shape[0]
    u, v = [], []
    for e in range(n_edges):        # edge e = (i -> j)
        j = ind_j[e]
        for f_ in range(n_edges):   # edge f = (j -> k)
            if ind_i[f_] == j and ind_j[f_] != ind_i[e]:   # k != i
                u.append(e)
                v.append(f_)
    return np.array([u, v], dtype=np.int32)


def compute_bond_cosines(triplet_index, edge_attr):
    u, v = triplet_index
    r1 = -edge_attr[u]
    r2 = edge_attr[v]
    dot = jnp.sum(r1 * r2, axis=1)
    norm = jnp.linalg.norm(r1, axis=1) * jnp.linalg.norm(r2, axis=1)
    return jnp.clip(dot / norm, -1.0, 1.0)


# ----------------------------------------------------------------------------
# full ALIGNN forward
# ----------------------------------------------------------------------------
def alignn_forward(params, x, edge_attr, edge_index, triplet_index, batch, num_graphs):
    idx_i = jnp.asarray(edge_index[0], jnp.int32)
    idx_j = jnp.asarray(edge_index[1], jnp.int32)
    t_i = jnp.asarray(triplet_index[0], jnp.int32)
    t_j = jnp.asarray(triplet_index[1], jnp.int32)

    triplet_attr = compute_bond_cosines(triplet_index, edge_attr).reshape(-1, 1)

    # embeddings (edge/angle RBF+MLP+MLP chains fused into one kernel each)
    hx = call_mlp(x, params["atom_emb"])
    hy = call_embed(edge_attr, params["edge_rbf_centers"], params["edge_rbf_gamma"],
                    params["edge_mlp1"], params["edge_mlp2"])
    hz = call_embed(triplet_attr, params["angle_rbf_centers"], params["angle_rbf_gamma"],
                    params["angle_mlp1"], params["angle_mlp2"])

    # ALIGNN layers (edge_update on the line graph, then node_update)
    for lp in params["alignn_layers"]:
        m, hz = call_eggc(hy, hz, t_i, t_j, lp["edge_update"])
        hx, hy = call_eggc(hx, m, idx_i, idx_j, lp["node_update"])

    # plain GCN layers
    for lp in params["gcn_layers"]:
        hx, hy = call_eggc(hx, hy, idx_i, idx_j, lp)

    # readout (mean per graph) + final linear
    batch_row = jnp.asarray(batch, jnp.int32).reshape(1, -1)
    out = call_readout(hx, batch_row, params["out"], num_graphs)
    return jnp.squeeze(out)


# ----------------------------------------------------------------------------
if __name__ == "__main__":
    key = jax.random.PRNGKey(0)
    k_param, k_x, k_e = jax.random.split(key, 3)

    # synthetic batched graph: 2 graphs x 4 nodes, directed cycle both ways
    base = np.array([[0, 1, 1, 2, 2, 3, 3, 0],
                     [1, 0, 2, 1, 3, 2, 0, 3]], dtype=np.int32)
    edge_index = np.concatenate([base, base + 4], axis=1)          # (2, 16)
    batch = np.array([0, 0, 0, 0, 1, 1, 1, 1], dtype=np.int32)     # (8,)
    num_nodes = 8
    num_edges = edge_index.shape[1]
    num_graphs = 2

    x = jax.random.normal(k_x, (num_nodes, 1), jnp.float32)        # node features
    edge_attr = jax.random.uniform(k_e, (num_edges, 1), jnp.float32,
                                   minval=2.0, maxval=4.0)         # bond "distance"

    triplet_index = create_line_graph(edge_index)                  # (2, T)

    params = init_alignn(k_param, node_in=1, emb=64, trip_bins=32,
                         hidden=128, out_size=1, centers=32,
                         a_layers=2, g_layers=2)

    out = alignn_forward(params, x, edge_attr, edge_index,
                         triplet_index, batch, num_graphs)
    out = jax.block_until_ready(out)
    assert out.shape == (num_graphs,)
    assert bool(jnp.all(jnp.isfinite(out)))
    print("KERNEL_OK")
</pallas_src>

<mosaic_0001>
module attributes {stable_mosaic.version = 11 : i64} {
  func.func @mlp_kernel(%arg0: memref<8x1xf32, #tpu.memory_space<vmem>>, %arg1: memref<1x128xbf16, #tpu.memory_space<vmem>>, %arg2: memref<1x128xf32, #tpu.memory_space<vmem>>, %arg3: memref<1x128xf32, #tpu.memory_space<vmem>>, %arg4: memref<1x128xf32, #tpu.memory_space<vmem>>, %arg5: memref<8x128xf32, #tpu.memory_space<vmem>>) attributes {dimension_semantics = [], scalar_prefetch = 0 : i64, scratch_operands = 0 : i64, tpu.core_type = #tpu.core_type<tc>} {
    %c0 = arith.constant 0 : index
    %c0_0 = arith.constant 0 : index
    %0 = vector.load %arg0[%c0, %c0_0] : memref<8x1xf32, #tpu.memory_space<vmem>>, vector<8x1xf32>
    %c0_1 = arith.constant 0 : index
    %c0_2 = arith.constant 0 : index
    %1 = vector.load %arg1[%c0_1, %c0_2] : memref<1x128xbf16, #tpu.memory_space<vmem>>, vector<1x128xbf16>
    %c0_3 = arith.constant 0 : index
    %c0_4 = arith.constant 0 : index
    %2 = vector.load %arg2[%c0_3, %c0_4] : memref<1x128xf32, #tpu.memory_space<vmem>>, vector<1x128xf32>
    %3 = arith.truncf %0 : vector<8x1xf32> to vector<8x1xbf16>
    %cst = arith.constant dense<0.000000e+00> : vector<8x128xf32>
    %4 = tpu.matmul %3, %1, %cst {dimension_numbers = #tpu.dot_dimension_numbers<[1], [0], [0], [1], [0, 0, 1, 1], [], []>} : vector<8x1xbf16>, vector<1x128xbf16>, vector<8x128xf32> -> vector<8x128xf32>
    %5 = vector.broadcast %2 : vector<1x128xf32> to vector<8x128xf32>
    %6 = arith.addf %4, %5 : vector<8x128xf32>
    %c0_5 = arith.constant 0 : index
    %c0_6 = arith.constant 0 : index
    %7 = vector.load %arg3[%c0_5, %c0_6] : memref<1x128xf32, #tpu.memory_space<vmem>>, vector<1x128xf32>
    %c0_7 = arith.constant 0 : index
    %c0_8 = arith.constant 0 : index
    %8 = vector.load %arg4[%c0_7, %c0_8] : memref<1x128xf32, #tpu.memory_space<vmem>>, vector<1x128xf32>
    %cst_9 = arith.constant dense<0.000000e+00> : vector<128xf32>
    %9 = vector.multi_reduction <add>, %6, %cst_9 [0] : vector<8x128xf32> to vector<128xf32>
    %10 = vector.shape_cast %9 : vector<128xf32> to vector<1x128xf32>
    %cst_10 = arith.constant 8.000000e+00 : f32
    %11 = vector.broadcast %cst_10 : f32 to vector<1x128xf32>
    %12 = arith.divf %10, %11 : vector<1x128xf32>
    %13 = vector.broadcast %12 : vector<1x128xf32> to vector<8x128xf32>
    %14 = arith.subf %6, %13 : vector<8x128xf32>
    %15 = arith.mulf %14, %14 : vector<8x128xf32>
    %cst_11 = arith.constant dense<0.000000e+00> : vector<128xf32>
    %16 = vector.multi_reduction <add>, %15, %cst_11 [0] : vector<8x128xf32> to vector<128xf32>
    %17 = vector.shape_cast %16 : vector<128xf32> to vector<1x128xf32>
    %cst_12 = arith.constant 8.000000e+00 : f32
    %18 = vector.broadcast %cst_12 : f32 to vector<1x128xf32>
    %19 = arith.divf %17, %18 : vector<1x128xf32>
    %20 = vector.broadcast %12 : vector<1x128xf32> to vector<8x128xf32>
    %21 = arith.subf %6, %20 : vector<8x128xf32>
    %22 = vector.broadcast %7 : vector<1x128xf32> to vector<8x128xf32>
    %23 = arith.mulf %22, %21 : vector<8x128xf32>
    %cst_13 = arith.constant 9.99999974E-6 : f32
    %24 = vector.broadcast %cst_13 : f32 to vector<1x128xf32>
    %25 = arith.addf %19, %24 : vector<1x128xf32>
    %26 = math.rsqrt %25 : vector<1x128xf32>
    %27 = vector.broadcast %26 : vector<1x128xf32> to vector<8x128xf32>
    %28 = arith.mulf %23, %27 : vector<8x128xf32>
    %29 = vector.broadcast %8 : vector<1x128xf32> to vector<8x128xf32>
    %30 = arith.addf %28, %29 : vector<8x128xf32>
    %31 = arith.negf %30 : vector<8x128xf32>
    %32 = math.exp %31 : vector<8x128xf32>
    %cst_14 = arith.constant 1.000000e+00 : f32
    %33 = vector.broadcast %cst_14 : f32 to vector<8x128xf32>
    %34 = arith.addf %33, %32 : vector<8x128xf32>
    %35 = arith.divf %33, %34 : vector<8x128xf32>
    %36 = arith.mulf %30, %35 : vector<8x128xf32>
    %c0_15 = arith.constant 0 : index
    %c0_16 = arith.constant 0 : index
    %37 = vector.load %arg5[%c0_15, %c0_16] : memref<8x128xf32, #tpu.memory_space<vmem>>, vector<8x128xf32>
    tpu.vector_store %arg5[%c0_15, %c0_16], %36 {strides = array<i32>} : memref<8x128xf32, #tpu.memory_space<vmem>>, vector<8x128xf32>,
    return
  }
}

</mosaic_0001>

<llo_original>
// kernel: tpu_custom_call.1
$region0: #{tpu_custom_call.1}
  #allocation0 [shape = 'u32[]', space=smem, size = 0x4, offset = 0x4, fixed_abs, tag = 'smem constant byte address 0x4 - core index']
  #allocation1 [shape = 'u32[144,128]{1,0:T(1,128)}', space=vmem, size = 0x12000, scoped, tag = 'internal scratch']
  %s0 = inlined_call_operand.hbm [shape: f32[8,1], index: 0, kind: input, shape index: {}]
  %s1 = inlined_call_operand.hbm [shape: bf16[1,128], index: 1, kind: input, shape index: {}]
  %s2 = inlined_call_operand.hbm [shape: f32[1,128], index: 2, kind: input, shape index: {}]
  %s3 = inlined_call_operand.hbm [shape: f32[1,128], index: 3, kind: input, shape index: {}]
  %s4 = inlined_call_operand.hbm [shape: f32[1,128], index: 4, kind: input, shape index: {}]
  %s5 = inlined_call_operand.hbm [shape: f32[8,128], index: 5, kind: output, shape index: {}]
  %s6 = sld [smem:[#allocation0]]
  $region50: #{tpu_custom_call.1} parent=0
    _
  %s8 = ssub.s32 1, %s6
  %s9 = scalar_select 0, %s8, %s6
  $region1: #{tpu_custom_call.1} parent=0
    #allocation2 [shape = 'u8[4096]{0}', space=vmem, size = 0x1000, scoped, tag = 'input window, operand 0, single buffered']
    #allocation3 [shape = 's32[1]{0}', space=sflag, size = 0x4, scoped, tag = 'scoped memory for tpu_custom_call.1']
    #allocation4 [shape = 's32[1]{0}', space=sflag, size = 0x4, scoped, tag = 'scoped memory for tpu_custom_call.1']
    #allocation5 [shape = 'u8[512]{0}', space=vmem, size = 0x400, scoped, tag = 'input window, operand 1, single buffered']
    #allocation6 [shape = 's32[1]{0}', space=sflag, size = 0x4, scoped, tag = 'scoped memory for tpu_custom_call.1']
    #allocation7 [shape = 'u8[512]{0}', space=vmem, size = 0x400, scoped, tag = 'input window, operand 2, single buffered']
    #allocation8 [shape = 'u8[512]{0}', space=vmem, size = 0x400, scoped, tag = 'input window, operand 3, single buffered']
    #allocation9 [shape = 's32[1]{0}', space=sflag, size = 0x4, scoped, tag = 'scoped memory for tpu_custom_call.1']
    #allocation10 [shape = 'u8[512]{0}', space=vmem, size = 0x400, scoped, tag = 'input window, operand 4, single buffered']
    #allocation11 [shape = 'u8[4096]{0}', space=vmem, size = 0x1000, scoped, tag = 'output window, operand 0, single buffered']
    %10 = vsyncpa [#allocation3], 0
    %11 = vsyncpa [#allocation6], 0
    %12 = vsyncpa [#allocation9], 0
    %13 = vsyncpa [#allocation4], 0
    // Predicated region
    $region2: #{tpu_custom_call.1} parent=1 // pred_check
      _
    $region3: #{tpu_custom_call.1} parent=1 // pred_check_branch
      %15 = sbr.rel (0) target = $region5
    $region4: #{tpu_custom_call.1} parent=1 // pred_region
      %s17 = ssub.s32 128, 128
      %18 = vsyncadd [#allocation3], %s17
      %s20 = sshll.u32 [#allocation2], 4
      %s21 = int_to_ptr.vmem [resolvable:$true] %s20
      %23 = dma.hbm_to_vmem [thread:$0]  %s0, 128, %s21, [#allocation3]
    $region5: #{tpu_custom_call.1} parent=1 // pred_fallthru
      _
    // Predicated region
    $region6: #{tpu_custom_call.1} parent=1 // pred_check
      _
    $region7: #{tpu_custom_call.1} parent=1 // pred_check_branch
      %25 = sbr.rel (0) target = $region9
    $region8: #{tpu_custom_call.1} parent=1 // pred_region
      %s27 = ssub.s32 16, 16
      %28 = vsyncadd [#allocation6], %s27
      %s30 = sshll.u32 [#allocation5], 4
      %s31 = int_to_ptr.vmem [resolvable:$true] %s30
      %33 = dma.hbm_to_vmem [thread:$0]  %s1, 16, %s31, [#allocation6]
    $region9: #{tpu_custom_call.1} parent=1 // pred_fallthru
      _
    // Predicated region
    $region10: #{tpu_custom_call.1} parent=1 // pred_check
      _
    $region11: #{tpu_custom_call.1} parent=1 // pred_check_branch
      %35 = sbr.rel (0) target = $region13
    $region12: #{tpu_custom_call.1} parent=1 // pred_region
      %s37 = ssub.s32 16, 16
      %38 = vsyncadd [#allocation6], %s37
      %s40 = sshll.u32 [#allocation7], 4
      %s41 = int_to_ptr.vmem [resolvable:$true] %s40
      %43 = dma.hbm_to_vmem [thread:$0]  %s2, 16, %s41, [#allocation6]
    $region13: #{tpu_custom_call.1} parent=1 // pred_fallthru
      _
    // Predicated region
    $region14: #{tpu_custom_call.1} parent=1 // pred_check
      _
    $region15: #{tpu_custom_call.1} parent=1 // pred_check_branch
      %45 = sbr.rel (0) target = $region17
    $region16: #{tpu_custom_call.1} parent=1 // pred_region
      %s47 = ssub.s32 16, 16
      %48 = vsyncadd [#allocation9], %s47
      %s50 = sshll.u32 [#allocation8], 4
      %s51 = int_to_ptr.vmem [resolvable:$true] %s50
      %53 = dma.hbm_to_vmem [thread:$0]  %s3, 16, %s51, [#allocation9]
    $region17: #{tpu_custom_call.1} parent=1 // pred_fallthru
      _
    // Predicated region
    $region18: #{tpu_custom_call.1} parent=1 // pred_check
      _
    $region19: #{tpu_custom_call.1} parent=1 // pred_check_branch
      %55 = sbr.rel (0) target = $region21
    $region20: #{tpu_custom_call.1} parent=1 // pred_region
      %s57 = ssub.s32 16, 16
      %58 = vsyncadd [#allocation9], %s57
      %s60 = sshll.u32 [#allocation10], 4
      %s61 = int_to_ptr.vmem [resolvable:$true] %s60
      %63 = dma.hbm_to_vmem [thread:$0]  %s4, 16, %s61, [#allocation9]
    $region21: #{tpu_custom_call.1} parent=1 // pred_fallthru
      _
    // Predicated region
    $region22: #{tpu_custom_call.1} parent=1 // pred_check
      _
    $region23: #{tpu_custom_call.1} parent=1 // pred_check_branch
      %65 = sbr.rel (0) target = $region25
    $region24: #{tpu_custom_call.1} parent=1 // pred_region
      %66 = dma.done [#allocation3], 128
    $region25: #{tpu_custom_call.1} parent=1 // pred_fallthru
      _
    // Predicated region
    $region26: #{tpu_custom_call.1} parent=1 // pred_check
      _
    $region27: #{tpu_custom_call.1} parent=1 // pred_check_branch
      %68 = sbr.rel (0) target = $region29
    $region28: #{tpu_custom_call.1} parent=1 // pred_region
      %69 = dma.done [#allocation6], 16
    $region29: #{tpu_custom_call.1} parent=1 // pred_fallthru
      _
    // Predicated region
    $region30: #{tpu_custom_call.1} parent=1 // pred_check
      _
    $region31: #{tpu_custom_call.1} parent=1 // pred_check_branch
      %71 = sbr.rel (0) target = $region33
    $region32: #{tpu_custom_call.1} parent=1 // pred_region
      %72 = dma.done [#allocation6], 16
    $region33: #{tpu_custom_call.1} parent=1 // pred_fallthru
      _
    // Predicated region
    $region34: #{tpu_custom_call.1} parent=1 // pred_check
      _
    $region35: #{tpu_custom_call.1} parent=1 // pred_check_branch
      %74 = sbr.rel (0) target = $region37
    $region36: #{tpu_custom_call.1} parent=1 // pred_region
      %75 = dma.done [#allocation9], 16
    $region37: #{tpu_custom_call.1} parent=1 // pred_fallthru
      _
    // Predicated region
    $region38: #{tpu_custom_call.1} parent=1 // pred_check
      _
    $region39: #{tpu_custom_call.1} parent=1 // pred_check_branch
      %77 = sbr.rel (0) target = $region41
    $region40: #{tpu_custom_call.1} parent=1 // pred_region
      %78 = dma.done [#allocation9], 16
    $region41: #{tpu_custom_call.1} parent=1 // pred_fallthru
      _
    %v80 = vld [vmem:[#allocation2] sm:$0xff]
    %v81 = vld [vmem:[#allocation5] sm:$0x1]
    %v82 = vld [vmem:[#allocation7] sm:$0x1]
    %v83 = vpack.c.bf16 %v80, %v80
    %v85 = vlaneseq
    %v86 = vshrl.u32 %v85, 7
    %v87 = vsub.s32 0, %v86
    %v88 = vrot.slane %v82, %v87
    %vm90 = vcmask 7168
    %v92 = vsel %vm90, %v83, 0
    %vm94 = vcmask 1040384
    %v95 = vsel 0, 4294967295, 65535
    %v96 = vsel %vm94, %v95, 0
    %v98 = vand.u32 %v81, %v96
    %100 = vmatprep.subr.bf16.mxu0 0
    %101 = vmatpush1.bf16.msra.mxu0 %v98
    %102 = vmatprep.subr.bf16.mxu0 0
    %103 = vmatpush1.bf16.msra.mxu0 0
    %104 = vmatprep.subr.bf16.mxu0 0
    %105 = vmatpush1.bf16.msra.mxu0 0
    %106 = vmatprep.subr.bf16.mxu0 0
    %107 = vmatpush1.bf16.msra.mxu0 0
    %108 = vmatprep.subr.bf16.mxu0 0
    %109 = vmatpush1.bf16.msra.mxu0 0
    %110 = vmatprep.subr.bf16.mxu0 0
    %111 = vmatpush1.bf16.msra.mxu0 0
    %112 = vmatprep.subr.bf16.mxu0 0
    %113 = vmatpush1.bf16.msra.mxu0 0
    %114 = vmatprep.subr.bf16.mxu0 0
    %115 = vmatpush1.bf16.msra.mxu0 0
    %116 = vmatprep.subr.bf16.mxu0 0
    %117 = vmatpush1.bf16.msra.mxu0 0
    %118 = vmatprep.subr.bf16.mxu0 0
    %119 = vmatpush1.bf16.msra.mxu0 0
    %120 = vmatprep.subr.bf16.mxu0 0
    %121 = vmatpush1.bf16.msra.mxu0 0
    %122 = vmatprep.subr.bf16.mxu0 0
    %123 = vmatpush1.bf16.msra.mxu0 0
    %124 = vmatprep.subr.bf16.mxu0 0
    %125 = vmatpush1.bf16.msra.mxu0 0
    %126 = vmatprep.subr.bf16.mxu0 0
    %127 = vmatpush1.bf16.msra.mxu0 0
    %128 = vmatprep.subr.bf16.mxu0 0
    %129 = vmatpush1.bf16.msra.mxu0 0
    %130 = vmatprep.subr.bf16.mxu0 0
    %131 = vmatpush1.bf16.msra.mxu0 0
    %132 = vmatprep.mubr.bf16.mxu0 0
    %133 = vmatmul.mubr.bf16.gmra.mrb[0].mxu0 %v92
    %v134 = vpop.f32.mrb[0].mxu0
    %v135 = vadd.f32 %v88, %v134
    %v136 = vpop.f32.mrb[0].mxu0
    %v137 = vpop.f32.mrb[0].mxu0
    %v138 = vpop.f32.mrb[0].mxu0
    %139 = vdwg.mxu0
    %v140 = vld [vmem:[#allocation8] sm:$0x1]
    %v141 = vld [vmem:[#allocation10] sm:$0x1]
    %v142 = vrot.slane %v135, 4
    %v143 = vadd.f32 %v135, %v142
    %v144 = vrot.slane %v143, 2
    %v145 = vadd.f32 %v143, %v144
    %v146 = vrot.slane %v145, 1
    %v147 = vadd.f32 %v145, %v146
    %v148 = vrcp.pop 8.0
    %v149 = vmul.f32 %v147, %v148
    %v150 = vsub.f32 %v135, %v149
    %v151 = vmul.f32 %v150, %v150
    %v152 = vrot.slane %v151, 4
    %v153 = vadd.f32 %v151, %v152
    %v154 = vrot.slane %v153, 2
    %v155 = vadd.f32 %v153, %v154
    %v156 = vrot.slane %v155, 1
    %v157 = vadd.f32 %v155, %v156
    %v158 = vmul.f32 %v157, %v148
    %v160 = vlaneseq
    %v161 = vshrl.u32 %v160, 7
    %v162 = vsub.s32 0, %v161
    %v163 = vrot.slane %v140, %v162
    %v165 = vmul.f32 %v163, %v150
    %v166 = vadd.f32 %v158, 1e-05
    %v167 = vrsqrt.pop %v166
    %v168 = vmul.f32 %v165, %v167
    %v170 = vlaneseq
    %v171 = vshrl.u32 %v170, 7
    %v172 = vsub.s32 0, %v171
    %v173 = vrot.slane %v141, %v172
    %v175 = vadd.f32 %v168, %v173
    %v176 = vxor.u32 %v175, 2147483648
    %v177 = vmul.f32 %v176, 1.442695
    %v178 = vpow.pop %v177
    %v179 = vadd.f32 %v178, 1.0
    %v180 = vrcp.pop %v179
    %v181 = vmul.f32 1.0, %v180
    %v182 = vmul.f32 %v175, %v181
    %183 = vst [vmem:[#allocation11] sm:$0xff] %v182
    // Predicated region
    $region42: #{tpu_custom_call.1} parent=1 // pred_check
      _
    $region43: #{tpu_custom_call.1} parent=1 // pred_check_branch
      %185 = sbr.rel (0) target = $region45
    $region44: #{tpu_custom_call.1} parent=1 // pred_region
      %s187 = ssub.s32 128, 128
      %188 = vsyncadd [#allocation4], %s187
      %s190 = sshll.u32 [#allocation11], 4
      %s191 = int_to_ptr.vmem [resolvable:$true] %s190
      %193 = dma.vmem_to_hbm [thread:$0]  %s191, 128, %s5, [#allocation4]
    $region45: #{tpu_custom_call.1} parent=1 // pred_fallthru
      _
    // Predicated region
    $region46: #{tpu_custom_call.1} parent=1 // pred_check
      _
    $region47: #{tpu_custom_call.1} parent=1 // pred_check_branch
      %195 = sbr.rel (0) target = $region49
    $region48: #{tpu_custom_call.1} parent=1 // pred_region
      %196 = dma.done [#allocation4], 128
    $region49: #{tpu_custom_call.1} parent=1 // pred_fallthru
      _
    %197 = vsyncpa [#allocation3], 1
    %198 = vsyncpa [#allocation6], 1
    %199 = vsyncpa [#allocation9], 1
    %200 = vsyncpa [#allocation4], 1

</llo_original>
